<compile_context>
chip_gen: v6e
topology: v6e:2x2x1
jax: 0.10.0
libtpu: 0.0.40
codegen_flags: <defaults>
</compile_context>

<pallas_src>
import jax
import jax.numpy as jnp
from jax.experimental import pallas as pl
from jax.experimental.pallas import tpu as pltpu


def _round_up(a, m):
    return (a + m - 1) // m * m


def _tpu_vmem_bytes():
    try:
        return int(pltpu.get_tpu_info().vmem_capacity_bytes)
    except Exception:
        return 64 << 20  # conservative (v7x per-TC VMEM); plan then fits every gen


def _pick_tm(B):
    """Batch tile in {256,128,64,32} (multiple of 32 keeps int8 mask tiles aligned).

    Pick the tile that minimizes padded batch rows; on ties prefer the bigger tile
    (fills the 256-wide MXU M dim on v6e/v7x and amortizes per-step overhead).
    """
    b32 = _round_up(max(B, 1), 32)
    best = None
    for tm in (256, 128, 64, 32):
        bp = _round_up(b32, tm)
        if best is None or bp < best[0] or (bp == best[0] and tm > best[1]):
            best = (bp, tm)
    return best[1], best[0]  # (TM, Bp)


# --------------------------- kernels ---------------------------

def _make_encoder_resident_kernel(td):
    """h = relu((mask * x) @ We + be); full We resident in VMEM, k-sliced in-kernel."""
    def kernel(x_ref, m_ref, we_ref, be_ref, h_ref, acc_ref):
        k = pl.program_id(1)

        @pl.when(k == 0)
        def _():
            acc_ref[...] = jnp.zeros_like(acc_ref)

        # masking on the VPU; mask (int8/bf16) cast in-register
        x_masked = x_ref[...] * m_ref[...].astype(x_ref.dtype)
        koff = pl.multiple_of(k * td, td)
        acc_ref[...] += jnp.dot(x_masked, we_ref[pl.ds(koff, td), :],
                                preferred_element_type=jnp.float32)

        @pl.when(k == pl.num_programs(1) - 1)
        def _():
            h_ref[...] = jnp.maximum(acc_ref[...] + be_ref[...], 0.0).astype(h_ref.dtype)

    return kernel


def _encoder_streamed_kernel(x_ref, m_ref, we_ref, be_ref, h_ref, acc_ref):
    """Same math, but We streamed in (TD, HID) chunks (fallback for huge weights)."""
    k = pl.program_id(1)

    @pl.when(k == 0)
    def _():
        acc_ref[...] = jnp.zeros_like(acc_ref)

    x_masked = x_ref[...] * m_ref[...].astype(x_ref.dtype)
    acc_ref[...] += jnp.dot(x_masked, we_ref[...], preferred_element_type=jnp.float32)

    @pl.when(k == pl.num_programs(1) - 1)
    def _():
        h_ref[...] = jnp.maximum(acc_ref[...] + be_ref[...], 0.0).astype(h_ref.dtype)


def _decoder_kernel(h_ref, wd_ref, bd_ref, y_ref):
    """y[:, j-slab] = h @ Wd[:, j-slab] + bd[j-slab]  (lane-dense output slab)."""
    y = jnp.dot(h_ref[...], wd_ref[...], preferred_element_type=jnp.float32)
    y_ref[...] = (y + bd_ref[...]).astype(y_ref.dtype)


# --------------------------- wrapper ---------------------------

def masked_autoencoder(x_nchw, mask_nchw, w_enc, b_enc, w_dec, b_dec):
    B, C, H, W = x_nchw.shape
    D = C * H * W
    HID = w_enc.shape[1]

    bf16, f32 = jnp.bfloat16, jnp.float32
    out_dtype = x_nchw.dtype

    # ---- per-generation budgets / tile sizes ----
    vmem_cap = _tpu_vmem_bytes()
    big_vmem = vmem_cap >= (128 << 20)          # v5e / v6e
    budget = (96 << 20) if big_vmem else (48 << 20)
    td_max = 1024 if big_vmem else 512

    TM, Bp = _pick_tm(B)
    TD = min(td_max, _round_up(D, 128))         # feature slab width (multiple of 128)
    Dp = _round_up(D, TD)

    # ---- operands: bf16 matmul inputs, f32 biases, narrow mask ----
    x2d = x_nchw.reshape(B, D)
    m2d = mask_nchw.reshape(B, D)
    if jnp.issubdtype(m2d.dtype, jnp.floating):
        m2d = m2d.astype(bf16)                  # float masks: keep values, half the bytes
    else:
        m2d = m2d.astype(jnp.int8)              # binary masks: 1 byte/elem

    # zero-padding is exact: padded x columns hit zero We rows; padded batch rows and
    # padded output columns are sliced away.  Skip the HBM round trip when aligned.
    x_p = x2d.astype(bf16)
    m_p = m2d
    if (Bp, Dp) != (B, D):
        x_p = jnp.zeros((Bp, Dp), bf16).at[:B, :D].set(x_p)
        m_p = jnp.zeros((Bp, Dp), m_p.dtype).at[:B, :D].set(m_p)

    we_p = w_enc.astype(bf16)                   # (D, HID) — HID stays unpadded in HBM
    wd_p = w_dec.astype(bf16)                   # (HID, D)
    be_p = b_enc.astype(f32).reshape(1, HID)
    bd_p = b_dec.astype(f32).reshape(1, D)
    if Dp != D:
        we_p = jnp.zeros((Dp, HID), bf16).at[:D, :].set(we_p)
        wd_p = jnp.zeros((HID, Dp), bf16).at[:, :D].set(wd_p)
        bd_p = jnp.zeros((1, Dp), f32).at[:, :D].set(bd_p)

    msize = jnp.dtype(m_p.dtype).itemsize

    # ---- encoder: batch-parallel, D-chunked reduction into an f32 VMEM accumulator ----
    xm_block = 2 * TM * TD * (2 + msize)                 # x + mask, double-buffered
    h_block = 2 * TM * HID * 2 + TM * HID * 4            # h out (double) + f32 acc scratch
    be_block = 2 * HID * 4
    we_resident_bytes = 2 * Dp * HID * 2                 # full We (pessimistic double buffer)
    we_streamed_bytes = 2 * TD * HID * 2

    use_resident_we = (xm_block + h_block + be_block + we_resident_bytes + (8 << 20)) <= budget
    if use_resident_we:
        enc_kernel = _make_encoder_resident_kernel(TD)
        we_spec = pl.BlockSpec((Dp, HID), lambda i, k: (0, 0))   # constant index -> DMA'd once
        enc_bytes = xm_block + h_block + be_block + we_resident_bytes
    else:
        enc_kernel = _encoder_streamed_kernel
        we_spec = pl.BlockSpec((TD, HID), lambda i, k: (k, 0))
        enc_bytes = xm_block + h_block + be_block + we_streamed_bytes
    enc_limit = int(min(budget, max(enc_bytes + (8 << 20), 32 << 20)))

    # NOTE(v7x): with a single batch tile the encoder's only parallel axis has one
    # block, so it runs on one TC; unavoidable for B <= 32 (the decoder's D axis still
    # covers both cores).
    h = pl.pallas_call(
        enc_kernel,
        out_shape=jax.ShapeDtypeStruct((Bp, HID), bf16),
        grid=(Bp // TM, Dp // TD),
        in_specs=[
            pl.BlockSpec((TM, TD), lambda i, k: (i, k)),   # x chunk (bf16)
            pl.BlockSpec((TM, TD), lambda i, k: (i, k)),   # mask chunk (int8/bf16)
            we_spec,                                       # We: resident or streamed
            pl.BlockSpec((1, HID), lambda i, k: (0, 0)),   # be (f32, resident)
        ],
        out_specs=pl.BlockSpec((TM, HID), lambda i, k: (i, 0)),
        scratch_shapes=[pltpu.VMEM((TM, HID), jnp.float32)],
        compiler_params=pltpu.CompilerParams(
            dimension_semantics=("parallel", "arbitrary"),
            vmem_limit_bytes=enc_limit),
    )(x_p, m_p, we_p, be_p)

    # ---- decoder: D-slab outer / batch inner so each Wd slab is fetched once ----
    dec_bytes = (2 * TM * HID * 2 + 2 * HID * TD * 2 + 2 * TD * 4
                 + 2 * TM * TD * jnp.dtype(out_dtype).itemsize)
    dec_limit = int(min(budget, max(dec_bytes + (8 << 20), 32 << 20)))

    y = pl.pallas_call(
        _decoder_kernel,
        out_shape=jax.ShapeDtypeStruct((Bp, Dp), out_dtype),
        grid=(Dp // TD, Bp // TM),
        in_specs=[
            pl.BlockSpec((TM, HID), lambda j, i: (i, 0)),  # h (tiny -> cheap to restream)
            pl.BlockSpec((HID, TD), lambda j, i: (0, j)),  # Wd slab: constant across inner i sweep
            pl.BlockSpec((1, TD), lambda j, i: (0, j)),    # bd slab
        ],
        out_specs=pl.BlockSpec((TM, TD), lambda j, i: (i, j)),  # lane-dense output slab
        compiler_params=pltpu.CompilerParams(
            dimension_semantics=("parallel", "parallel"),
            vmem_limit_bytes=dec_limit),
    )(h, wd_p, bd_p)

    if (Bp, Dp) != (B, D):
        y = y[:B, :D]
    return y.reshape(B, C, H, W)


def reference(x_nchw, mask_nchw, w_enc, b_enc, w_dec, b_dec):
    B, C, H, W = x_nchw.shape
    D = C * H * W
    xm = (mask_nchw * x_nchw).reshape(B, D)
    h = jnp.maximum(xm @ w_enc + b_enc, 0.0)
    y = h @ w_dec + b_dec
    return y.reshape(B, C, H, W)


if __name__ == "__main__":
    B, C, H, W = 2, 4, 16, 16
    D = C * H * W
    HID = 32

    key = jax.random.PRNGKey(0)
    kx, km, kwe, kbe, kwd, kbd = jax.random.split(key, 6)

    x = jax.random.normal(kx, (B, C, H, W), dtype=jnp.float32)
    # binary mask (as in MAE); shipped to the kernel as int8 to cut HBM traffic
    mask = (jax.random.uniform(km, (B, C, H, W)) > 0.5).astype(jnp.int8)

    # deterministic parameter init (PyTorch-Linear-like uniform scaling), f32 weights
    lim_e = 1.0 / (D ** 0.5)
    lim_d = 1.0 / (HID ** 0.5)
    w_enc = jax.random.uniform(kwe, (D, HID), minval=-lim_e, maxval=lim_e, dtype=jnp.float32)
    b_enc = jax.random.uniform(kbe, (HID,), minval=-lim_e, maxval=lim_e, dtype=jnp.float32)
    w_dec = jax.random.uniform(kwd, (HID, D), minval=-lim_d, maxval=lim_d, dtype=jnp.float32)
    b_dec = jax.random.uniform(kbd, (D,), minval=-lim_d, maxval=lim_d, dtype=jnp.float32)

    out = masked_autoencoder(x, mask, w_enc, b_enc, w_dec, b_dec)
    out = jax.block_until_ready(out)

    ref = reference(x, mask.astype(jnp.float32), w_enc, b_enc, w_dec, b_dec)
    assert out.shape == (B, C, H, W)
    # bf16 matmul inputs with f32 accumulation -> tolerance relaxed vs the f32 reference
    assert jnp.allclose(out, ref, atol=3e-2, rtol=3e-2), "mismatch vs reference"

    print("KERNEL_OK")
</pallas_src>

<mosaic_0001>
module attributes {stable_mosaic.version = 11 : i64} {
  func.func @kernel(%arg0: i32, %arg1: i32, %arg2: memref<32x512xbf16, #tpu.memory_space<vmem>>, %arg3: memref<32x512xi8, #tpu.memory_space<vmem>>, %arg4: memref<1024x32xbf16, #tpu.memory_space<vmem>>, %arg5: memref<1x32xf32, #tpu.memory_space<vmem>>, %arg6: memref<32x32xbf16, #tpu.memory_space<vmem>>, %arg7: memref<32x32xf32, #tpu.memory_space<vmem>>) attributes {dimension_semantics = [#tpu.dimension_semantics<parallel>, #tpu.dimension_semantics<arbitrary>], iteration_bounds = array<i64: 1, 2>, scalar_prefetch = 0 : i64, scratch_operands = 1 : i64, tpu.core_type = #tpu.core_type<tc>, window_params = [{transform_indices = @transform_0, window_bounds = array<i64: 32, 512>}, {transform_indices = @transform_1, window_bounds = array<i64: 32, 512>}, {pipeline_mode = #tpu.pipeline_mode<synchronous>, transform_indices = @transform_2, window_bounds = array<i64: 1024, 32>}, {pipeline_mode = #tpu.pipeline_mode<synchronous>, transform_indices = @transform_3, window_bounds = array<i64: 1, 32>}, {transform_indices = @transform_4, window_bounds = array<i64: 32, 32>}]} {
    %c0_i32 = arith.constant 0 : i32
    %0 = arith.cmpi eq, %arg1, %c0_i32 : i32
    %1 = arith.extui %0 : i1 to i32
    %c0_i32_0 = arith.constant 0 : i32
    %2 = arith.cmpi ne, %1, %c0_i32_0 : i32
    scf.if %2 {
      %cst_10 = arith.constant 0.000000e+00 : f32
      %18 = vector.broadcast %cst_10 : f32 to vector<32x32xf32>
      %c0_11 = arith.constant 0 : index
      %c0_12 = arith.constant 0 : index
      %19 = vector.load %arg7[%c0_11, %c0_12] : memref<32x32xf32, #tpu.memory_space<vmem>>, vector<32x32xf32>
      tpu.vector_store %arg7[%c0_11, %c0_12], %18 {strides = array<i32>} : memref<32x32xf32, #tpu.memory_space<vmem>>, vector<32x32xf32>,
    } else {
    }
    %c0 = arith.constant 0 : index
    %c0_1 = arith.constant 0 : index
    %3 = vector.load %arg2[%c0, %c0_1] : memref<32x512xbf16, #tpu.memory_space<vmem>>, vector<32x512xbf16>
    %c0_2 = arith.constant 0 : index
    %c0_3 = arith.constant 0 : index
    %4 = vector.load %arg3[%c0_2, %c0_3] : memref<32x512xi8, #tpu.memory_space<vmem>>, vector<32x512xi8>
    %5 = arith.sitofp %4 : vector<32x512xi8> to vector<32x512xbf16>
    %6 = arith.mulf %3, %5 : vector<32x512xbf16>
    %c512_i32 = arith.constant 512 : i32
    %7 = arith.muli %arg1, %c512_i32 : i32
    %8 = tpu.assume_multiple %7, 512 : i32
    %c0_4 = arith.constant 0 : index
    %c0_5 = arith.constant 0 : index
    %9 = vector.load %arg7[%c0_4, %c0_5] : memref<32x32xf32, #tpu.memory_space<vmem>>, vector<32x32xf32>
    %10 = arith.index_cast %8 : i32 to index
    %c0_6 = arith.constant 0 : index
    %11 = vector.load %arg4[%10, %c0_6] : memref<1024x32xbf16, #tpu.memory_space<vmem>>, vector<512x32xbf16>
    %cst = arith.constant dense<0.000000e+00> : vector<32x32xf32>
    %12 = tpu.matmul %6, %11, %cst {dimension_numbers = #tpu.dot_dimension_numbers<[1], [0], [0], [1], [0, 0, 1, 1], [], []>} : vector<32x512xbf16>, vector<512x32xbf16>, vector<32x32xf32> -> vector<32x32xf32>
    %13 = arith.addf %9, %12 : vector<32x32xf32>
    %c0_7 = arith.constant 0 : index
    %c0_8 = arith.constant 0 : index
    %14 = vector.load %arg7[%c0_7, %c0_8] : memref<32x32xf32, #tpu.memory_space<vmem>>, vector<32x32xf32>
    tpu.vector_store %arg7[%c0_7, %c0_8], %13 {strides = array<i32>} : memref<32x32xf32, #tpu.memory_space<vmem>>, vector<32x32xf32>,
    %c1_i32 = arith.constant 1 : i32
    %15 = arith.cmpi eq, %arg1, %c1_i32 : i32
    %16 = arith.extui %15 : i1 to i32
    %c0_i32_9 = arith.constant 0 : i32
    %17 = arith.cmpi ne, %16, %c0_i32_9 : i32
    scf.if %17 {
      %c0_10 = arith.constant 0 : index
      %c0_11 = arith.constant 0 : index
      %18 = vector.load %arg7[%c0_10, %c0_11] : memref<32x32xf32, #tpu.memory_space<vmem>>, vector<32x32xf32>
      %c0_12 = arith.constant 0 : index
      %c0_13 = arith.constant 0 : index
      %19 = vector.load %arg5[%c0_12, %c0_13] : memref<1x32xf32, #tpu.memory_space<vmem>>, vector<1x32xf32>
      %20 = vector.broadcast %19 : vector<1x32xf32> to vector<32x32xf32>
      %21 = arith.addf %18, %20 : vector<32x32xf32>
      %cst_14 = arith.constant 0.000000e+00 : f32
      %22 = vector.broadcast %cst_14 : f32 to vector<32x32xf32>
      %23 = arith.maximumf %21, %22 : vector<32x32xf32>
      %24 = arith.truncf %23 : vector<32x32xf32> to vector<32x32xbf16>
      %c0_15 = arith.constant 0 : index
      %c0_16 = arith.constant 0 : index
      %25 = vector.load %arg6[%c0_15, %c0_16] : memref<32x32xbf16, #tpu.memory_space<vmem>>, vector<32x32xbf16>
      tpu.vector_store %arg6[%c0_15, %c0_16], %24 {strides = array<i32>} : memref<32x32xbf16, #tpu.memory_space<vmem>>, vector<32x32xbf16>,
    } else {
    }
    return
  }
  func.func @transform_0(%arg0: i32, %arg1: i32) -> (i32, i32) {
    %c0_i32 = arith.constant 0 : i32
    return %arg0, %arg1 : i32, i32
  }
  func.func @transform_1(%arg0: i32, %arg1: i32) -> (i32, i32) {
    %c0_i32 = arith.constant 0 : i32
    return %arg0, %arg1 : i32, i32
  }
  func.func @transform_2(%arg0: i32, %arg1: i32) -> (i32, i32) {
    %c0_i32 = arith.constant 0 : i32
    %c0_i32_0 = arith.constant 0 : i32
    %c0_i32_1 = arith.constant 0 : i32
    return %c0_i32, %c0_i32_0 : i32, i32
  }
  func.func @transform_3(%arg0: i32, %arg1: i32) -> (i32, i32) {
    %c0_i32 = arith.constant 0 : i32
    %c0_i32_0 = arith.constant 0 : i32
    %c0_i32_1 = arith.constant 0 : i32
    return %c0_i32, %c0_i32_0 : i32, i32
  }
  func.func @transform_4(%arg0: i32, %arg1: i32) -> (i32, i32) {
    %c0_i32 = arith.constant 0 : i32
    %c0_i32_0 = arith.constant 0 : i32
    return %arg0, %c0_i32 : i32, i32
  }
}

</mosaic_0001>

<llo_original>
// kernel: tpu_custom_call.1
$region0: #{tpu_custom_call.1}
  #allocation0 [shape = 'u32[]', space=smem, size = 0x4, offset = 0x4, fixed_abs, tag = 'smem constant byte address 0x4 - core index']
  #allocation1 [shape = 'u32[144,128]{1,0:T(1,128)}', space=vmem, size = 0x12000, scoped, tag = 'internal scratch']
  #allocation2 [shape = 'f32[32,32]{1,0:T(8,128)}', space=vmem, size = 0x4000, scoped, tag = 'scratch operand']
  %s0 = inlined_call_operand.vmem [shape: bf16[32,1024], index: 0, kind: input, shape index: {}]
  %s1 = inlined_call_operand.vmem [shape: s8[32,1024], index: 1, kind: input, shape index: {}]
  %s2 = inlined_call_operand.vmem [shape: bf16[1024,32], index: 2, kind: input, shape index: {}]
  %s3 = inlined_call_operand.vmem [shape: f32[1,32], index: 3, kind: input, shape index: {}]
  %s4 = inlined_call_operand.hbm [shape: bf16[32,32], index: 4, kind: output, shape index: {}]
  %s5 = sld [smem:[#allocation0]]
  $region80: #{tpu_custom_call.1} parent=0
    _
  %s7 = ssub.s32 1, %s5
  %s8 = scalar_select 0, %s7, %s5
  $region1: #{tpu_custom_call.1} parent=0
    #allocation3 [shape = 'u8[65536]{0}', space=vmem, size = 0x10000, scoped, tag = 'input window, operand 0']
    #allocation4 [shape = 'u8[8192]{0}', space=vmem, size = 0x2000, scoped, tag = 'output window, operand 0, single buffered']
    #allocation5 [shape = 's32[2]{0}', space=sflag, size = 0x8, scoped, tag = 'scoped memory for tpu_custom_call.1']
    %9 = vsyncpa [#allocation5], 0
    loop: start=0, step=1, limit=4
    $region2: #{tpu_custom_call.1} parent=1 // loop_pre_header
      _
    $region3: #{tpu_custom_call.1} parent=1 // loop_header
      %s11 = sphi 0, %s15
      %p12 = scmp.ge.s32.totalorder %s11, 4
      %s18 = sphi 0, %s30
      %s19 = sphi 0, %s26
      %s20 = sphi 0, %s18
      %s21 = sphi 0, %s19
      %s22 = sphi 0, %s20
      %s23 = sphi 0, %s21
      %s35 = sphi 0, %s37
      %s38 = sphi 0, %s35
      %s39 = sphi 0, %s38
      %s55 = sphi 0, %s39
      %s63 = sphi 0, %s65
      %s66 = sphi 0, %s63
      %s67 = sphi 0, %s66
      %s83 = sphi 0, %s67
      %s87 = sphi 0, %s87
      %s89 = sphi 0, %s87
      %s90 = sphi 0, %s89
      %s104 = sphi 0, %s90
      %s108 = sphi 0, %s108
      %s110 = sphi 0, %s108
      %s111 = sphi 0, %s110
      %s125 = sphi 0, %s111
      %s131 = sphi 0, %s133
      %s134 = sphi 0, %s131
      %s135 = sphi 0, %s134
      %s151 = sphi 0, %s135
    $region4: #{tpu_custom_call.1} parent=1 // loop_header_branch
      %14 = sbr.rel (%p12) target = $region8
    $region5: #{tpu_custom_call.1} parent=1 // loop_body
      %s16 = ssub.s32 %s11, 1
      %s17 = ssub.s32 %s11, 2
      %s24 = sadd.s32 1, %s19
      %p25 = scmp.ge.s32.totalorder %s24, 2
      %s26 = scalar_select %p25, 0, %s24
      %s27 = sadd.s32 1, %s18
      %s28 = scalar_select %p25, %s27, %s18
      %p29 = scmp.ge.s32.totalorder %s28, 1
      %s30 = scalar_select %p29, 0, %s28
      %s31 = ssub.s32 %s18, %s30
      %s32 = ssub.s32 %s19, %s26
      %s33 = sor.u32 %s31, %s32
      %p34 = scmp.eq.s32.totalorder %s33, 0
      %s36 = sadd.s32 %s35, 1
      %s37 = scalar_select %p34, %s35, %s36
      %p40 = pneg %p34
      %p41 = scmp.eq.s32.totalorder %s11, 1
      %p42 = por %p40, %p41
      %p43 = scmp.ne.s32.totalorder %s35, %s38
      %p44 = scmp.eq.s32.totalorder %s11, 0
      %p45 = por %p43, %p44
      %p46 = scmp.ne.s32.totalorder %s35, %s38
      %p47 = scmp.eq.s32.totalorder %s16, 1
      %p48 = por %p46, %p47
      %p49 = scmp.ne.s32.totalorder %s38, %s39
      %p50 = scmp.eq.s32.totalorder %s16, 0
      %p51 = por %p49, %p50
      %p52 = scmp.ne.s32.totalorder %s38, %s39
      %p53 = scmp.eq.s32.totalorder %s17, 1
      %p54 = por %p52, %p53
      %p56 = scmp.ne.s32.totalorder %s39, %s55
      %p57 = scmp.eq.s32.totalorder %s17, 0
      %p58 = por %p56, %p57
      %s59 = ssub.s32 %s18, %s30
      %s60 = ssub.s32 %s19, %s26
      %s61 = sor.u32 %s59, %s60
      %p62 = scmp.eq.s32.totalorder %s61, 0
      %s64 = sadd.s32 %s63, 1
      %s65 = scalar_select %p62, %s63, %s64
      %p68 = pneg %p62
      %p69 = scmp.eq.s32.totalorder %s11, 1
      %p70 = por %p68, %p69
      %p71 = scmp.ne.s32.totalorder %s63, %s66
      %p72 = scmp.eq.s32.totalorder %s11, 0
      %p73 = por %p71, %p72
      %p74 = scmp.ne.s32.totalorder %s63, %s66
      %p75 = scmp.eq.s32.totalorder %s16, 1
      %p76 = por %p74, %p75
      %p77 = scmp.ne.s32.totalorder %s66, %s67
      %p78 = scmp.eq.s32.totalorder %s16, 0
      %p79 = por %p77, %p78
      %p80 = scmp.ne.s32.totalorder %s66, %s67
      %p81 = scmp.eq.s32.totalorder %s17, 1
      %p82 = por %p80, %p81
      %p84 = scmp.ne.s32.totalorder %s67, %s83
      %p85 = scmp.eq.s32.totalorder %s17, 0
      %p86 = por %p84, %p85
      %s88 = sadd.s32 %s87, 1
      %p91 = scmp.eq.s32.totalorder %s11, 1
      %p92 = scmp.ne.s32.totalorder %s87, %s89
      %p93 = scmp.eq.s32.totalorder %s11, 0
      %p94 = por %p92, %p93
      %p95 = scmp.ne.s32.totalorder %s87, %s89
      %p96 = scmp.eq.s32.totalorder %s16, 1
      %p97 = por %p95, %p96
      %p98 = scmp.ne.s32.totalorder %s89, %s90
      %p99 = scmp.eq.s32.totalorder %s16, 0
      %p100 = por %p98, %p99
      %p101 = scmp.ne.s32.totalorder %s89, %s90
      %p102 = scmp.eq.s32.totalorder %s17, 1
      %p103 = por %p101, %p102
      %p105 = scmp.ne.s32.totalorder %s90, %s104
      %p106 = scmp.eq.s32.totalorder %s17, 0
      %p107 = por %p105, %p106
      %s109 = sadd.s32 %s108, 1
      %p112 = scmp.eq.s32.totalorder %s11, 1
      %p113 = scmp.ne.s32.totalorder %s108, %s110
      %p114 = scmp.eq.s32.totalorder %s11, 0
      %p115 = por %p113, %p114
      %p116 = scmp.ne.s32.totalorder %s108, %s110
      %p117 = scmp.eq.s32.totalorder %s16, 1
      %p118 = por %p116, %p117
      %p119 = scmp.ne.s32.totalorder %s110, %s111
      %p120 = scmp.eq.s32.totalorder %s16, 0
      %p121 = por %p119, %p120
      %p122 = scmp.ne.s32.totalorder %s110, %s111
      %p123 = scmp.eq.s32.totalorder %s17, 1
      %p124 = por %p122, %p123
      %p126 = scmp.ne.s32.totalorder %s111, %s125
      %p127 = scmp.eq.s32.totalorder %s17, 0
      %p128 = por %p126, %p127
      %s129 = ssub.s32 %s18, %s30
      %p130 = scmp.eq.s32.totalorder %s129, 0
      %s132 = sadd.s32 %s131, 1
      %s133 = scalar_select %p130, %s131, %s132
      %p136 = pneg %p130
      %p137 = scmp.eq.s32.totalorder %s11, 1
      %p138 = por %p136, %p137
      %p139 = scmp.ne.s32.totalorder %s131, %s134
      %p140 = scmp.eq.s32.totalorder %s11, 0
      %p141 = por %p139, %p140
      %p142 = scmp.ne.s32.totalorder %s131, %s134
      %p143 = scmp.eq.s32.totalorder %s16, 1
      %p144 = por %p142, %p143
      %p145 = scmp.ne.s32.totalorder %s134, %s135
      %p146 = scmp.eq.s32.totalorder %s16, 0
      %p147 = por %p145, %p146
      %p148 = scmp.ne.s32.totalorder %s134, %s135
      %p149 = scmp.eq.s32.totalorder %s17, 1
      %p150 = por %p148, %p149
      %p152 = scmp.ne.s32.totalorder %s135, %s151
      %p153 = scmp.eq.s32.totalorder %s17, 0
      %p154 = por %p152, %p153
      %p155 = scmp.le.s32.totalorder 1, %s11
      %p156 = scmp.lt.s32.totalorder %s11, 3
      %p157 = pnand %p155, %p156
      %p158 = pneg %p157
      // Predicated region
      $region9: #{tpu_custom_call.1} parent=5 // pred_check
        _
      $region10: #{tpu_custom_call.1} parent=5 // pred_check_branch
        %160 = sbr.rel (%p157) target = $region12
      $region11: #{tpu_custom_call.1} parent=5 // pred_region
        %s161 = ssub.s32 %s11, 1
        // Predicated region
        $region13: #{tpu_custom_call.1} parent=11 // pred_check
          %p162 = pneg %p100
        $region14: #{tpu_custom_call.1} parent=11 // pred_check_branch
          %164 = sbr.rel (%p162) target = $region16
        $region15: #{tpu_custom_call.1} parent=11 // pred_region
          _
        $region16: #{tpu_custom_call.1} parent=11 // pred_fallthru
          _
        // Predicated region
        $region17: #{tpu_custom_call.1} parent=11 // pred_check
          %p165 = pneg %p121
        $region18: #{tpu_custom_call.1} parent=11 // pred_check_branch
          %167 = sbr.rel (%p165) target = $region20
        $region19: #{tpu_custom_call.1} parent=11 // pred_region
          _
        $region20: #{tpu_custom_call.1} parent=11 // pred_fallthru
          _
      $region12: #{tpu_custom_call.1} parent=5 // pred_fallthru
        _
      %p168 = scmp.lt.s32.totalorder %s11, 2
      // Predicated region
      $region21: #{tpu_custom_call.1} parent=5 // pred_check
        %p169 = pneg %p168
      $region22: #{tpu_custom_call.1} parent=5 // pred_check_branch
        %171 = sbr.rel (%p169) target = $region24
      $region23: #{tpu_custom_call.1} parent=5 // pred_region
        // Predicated region
        $region25: #{tpu_custom_call.1} parent=23 // pred_check
          %p172 = pneg %p45
        $region26: #{tpu_custom_call.1} parent=23 // pred_check_branch
          %174 = sbr.rel (%p172) target = $region28
        $region27: #{tpu_custom_call.1} parent=23 // pred_region
          %s175 = sand.u32 %s35, 1
          %s176 = sand.u32 %s35, 1
          %s177 = smul.addr %s176, 64
          %s178 = scalar_lea.vmem [#allocation3], %s177
          %s179 = smul.u32 4, %s18
          %s180 = smul.u32 4, %s19
          %s181 = smul.addr %s179, 8
          %s182 = sadd.s32 %s180, %s181
          %s183 = smul.addr %s182, 4
          %s184 = scalar_lea.vmem %s0, %s183
          // Predicated region
          $region29: #{tpu_custom_call.1} parent=27 // pred_check
            _
          $region30: #{tpu_custom_call.1} parent=27 // pred_check_branch
            %186 = sbr.rel (0) target = $region32
          $region31: #{tpu_custom_call.1} parent=27 // pred_region
            // Predicated region
            $region33: #{tpu_custom_call.1} parent=31 // pred_check
              _
            $region34: #{tpu_custom_call.1} parent=31 // pred_check_branch
              %188 = sbr.rel (0) target = $region36
            $region35: #{tpu_custom_call.1} parent=31 // pred_region
              loop: start=0, step=1, limit=1
              $region37: #{tpu_custom_call.1} parent=35 // loop_pre_header
                _
              $region38: #{tpu_custom_call.1} parent=35 // loop_header
                %s190 = sphi 0, %s194
                %p191 = scmp.ge.s32.totalorder %s190, 1
                %s195 = sphi %s184, %s184
                %s196 = sphi %s178, %s178
              $region39: #{tpu_custom_call.1} parent=35 // loop_header_branch
                %193 = sbr.rel (%p191) target = $region43
              $region40: #{tpu_custom_call.1} parent=35 // loop_body
                %v197 = vld [vmem:[%s195] sm:$0xff]
                %198 = vst [vmem:[%s196] sm:$0xff] %v197
                %v199 = vld [vmem:[%s195 + $0x8] sm:$0xff]
                %200 = vst [vmem:[%s196 + $0x8] sm:$0xff] %v199
                %v201 = vld [vmem:[%s195 + $0x20] sm:$0xff]
                %202 = vst [vmem:[%s196 + $0x10] sm:$0xff] %v201
                %v203 = vld [vmem:[%s195 + $0x28] sm:$0xff]
                %204 = vst [vmem:[%s196 + $0x18] sm:$0xff] %v203
                %v205 = vld [vmem:[%s195 + $0x40] sm:$0xff]
                %206 = vst [vmem:[%s196 + $0x20] sm:$0xff] %v205
                %v207 = vld [vmem:[%s195 + $0x48] sm:$0xff]
                %208 = vst [vmem:[%s196 + $0x28] sm:$0xff] %v207
                %v209 = vld [vmem:[%s195 + $0x60] sm:$0xff]
                %210 = vst [vmem:[%s196 + $0x30] sm:$0xff] %v209
                %v211 = vld [vmem:[%s195 + $0x68] sm:$0xff]
                %212 = vst [vmem:[%s196 + $0x38] sm:$0xff] %v211
              $region41: #{tpu_custom_call.1} parent=35 // loop_footer
                %s194 = sadd.s32 1, %s190
              $region42: #{tpu_custom_call.1} parent=35 // loop_footer_branch
                %189 = sbr.rel target = $region38
              $region43: #{tpu_custom_call.1} parent=35 // loop_exit
                _
            $region36: #{tpu_custom_call.1} parent=31 // pred_fallthru
              _
            // Predicated region
            $region44: #{tpu_custom_call.1} parent=31 // pred_check
              _
            $region45: #{tpu_custom_call.1} parent=31 // pred_check_branch
              %214 = sbr.rel target = $region47
            $region46: #{tpu_custom_call.1} parent=31 // pred_region
              _
            $region47: #{tpu_custom_call.1} parent=31 // pred_fallthru
              _
          $region32: #{tpu_custom_call.1} parent=27 // pred_fallthru
            _
          %215 = vnop
        $region28: #{tpu_custom_call.1} parent=23 // pred_fallthru
          _
        // Predicated region
        $region48: #{tpu_custom_call.1} parent=23 // pred_check
          %p216 = pneg %p73
        $region49: #{tpu_custom_call.1} parent=23 // pred_check_branch
          %218 = sbr.rel (%p216) target = $region51
        $region50: #{tpu_custom_call.1} parent=23 // pred_region
          %s219 = smul.u32 4, %s19
          %p220 = scmp.lt.s32.totalorder %s18, 0
          %s221 = scalar_select %p220, %s18, 0
          %p222 = scmp.lt.s32.totalorder %s219, 7
          %s223 = scalar_select %p222, %s219, 7
          %s224 = smul.addr %s221, 8
          %s225 = sadd.s32 %s223, %s224
          %s226 = smul.addr %s225, 8
          %s227 = scalar_lea.vmem %s1, %s226
          %s228 = smul.u32 4, %s19
        $region51: #{tpu_custom_call.1} parent=23 // pred_fallthru
          _
      $region24: #{tpu_custom_call.1} parent=5 // pred_fallthru
        _
      %p229 = scmp.le.s32.totalorder 1, %s11
      %p230 = scmp.lt.s32.totalorder %s11, 3
      %p231 = pnand %p229, %p230
      %p232 = pneg %p231
      // Predicated region
      $region52: #{tpu_custom_call.1} parent=5 // pred_check
        _
      $region53: #{tpu_custom_call.1} parent=5 // pred_check_branch
        %234 = sbr.rel (%p231) target = $region55
      $region54: #{tpu_custom_call.1} parent=5 // pred_region
        %s235 = ssub.s32 %s11, 1
        %s236 = sand.u32 %s38, 1
        %s237 = sand.u32 %s38, 1
        %s238 = smul.addr %s237, 64
        %s239 = scalar_lea.vmem [#allocation3], %s238
        // Predicated region
        $region56: #{tpu_custom_call.1} parent=54 // pred_check
          %p240 = pneg %p51
        $region57: #{tpu_custom_call.1} parent=54 // pred_check_branch
          %242 = sbr.rel (%p240) target = $region59
        $region58: #{tpu_custom_call.1} parent=54 // pred_region
          _
        $region59: #{tpu_custom_call.1} parent=54 // pred_fallthru
          _
        %s243 = sand.u32 %s38, 1
        %s244 = sand.u32 %s38, 1
        %s245 = smul.addr %s244, 64
        %s246 = scalar_lea.vmem [#allocation3], %s245
        %p247 = pneg %p51
        %p248 = pneg %p48
        %s249 = smul.u32 4, %s21
        %p250 = scmp.lt.s32.totalorder %s20, 0
        %s251 = scalar_select %p250, %s20, 0
        %p252 = scmp.lt.s32.totalorder %s249, 7
        %s253 = scalar_select %p252, %s249, 7
        %s254 = smul.addr %s251, 8
        %s255 = sadd.s32 %s253, %s254
        %s256 = smul.addr %s255, 8
        %s257 = scalar_lea.vmem %s1, %s256
        %p258 = pneg %p79
        %p259 = pneg %p76
        %p260 = pneg %p100
        %p261 = pneg %p97
        %p262 = pneg %p121
        %p263 = pneg %p118
        %p264 = pneg %p147
        %p265 = pneg %p144
        %s266 = smul.u32 4, %s20
        %s267 = smul.u32 4, %s21
        %s268 = smul.u32 4, %s21
        %p269 = scmp.lt.s32.totalorder %s20, 0
        %s270 = scalar_select %p269, %s20, 0
        %p271 = scmp.lt.s32.totalorder %s268, 7
        %s272 = scalar_select %p271, %s268, 7
        %s273 = smul.addr %s270, 8
        %s274 = sadd.s32 %s272, %s273
        %s275 = smul.addr %s274, 8
        %s276 = scalar_lea.vmem %s1, %s275
        %s277 = smul.u32 4, %s21
        %s278 = smul.u32 4, %s20
        %p280 = scmp.eq.s32.totalorder %s21, 0
        // Predicated region
        $region60: #{tpu_custom_call.1} parent=54 // pred_check
          %p281 = pneg %p280
        $region61: #{tpu_custom_call.1} parent=54 // pred_check_branch
          %283 = sbr.rel (%p281) target = $region63
        $region62: #{tpu_custom_call.1} parent=54 // pred_region
          %vm284 = vcmask 261120
          %285 = vst.msk [vmem:[#allocation2] sm:$0xff] %vm284, 0.0
          %286 = vst.msk [vmem:[#allocation2 + $0x8] sm:$0xff] %vm284, 0.0
          %287 = vst.msk [vmem:[#allocation2 + $0x10] sm:$0xff] %vm284, 0.0
          %288 = vst.msk [vmem:[#allocation2 + $0x18] sm:$0xff] %vm284, 0.0
        $region63: #{tpu_custom_call.1} parent=54 // pred_fallthru
          _
        %v289 = vld [vmem:[%s239] sm:$0xff]
        %v290 = vld [vmem:[%s239 + $0x8] sm:$0xff]
        %v291 = vld [vmem:[%s239 + $0x10] sm:$0xff]
        %v292 = vld [vmem:[%s239 + $0x18] sm:$0xff]
        %v293 = vld [vmem:[%s239 + $0x20] sm:$0xff]
        %v294 = vld [vmem:[%s239 + $0x28] sm:$0xff]
        %v295 = vld [vmem:[%s239 + $0x30] sm:$0xff]
        %v296 = vld [vmem:[%s239 + $0x38] sm:$0xff]
        %v297 = vld [vmem:[%s276] sm:$0xff]
        %v298 = vld [vmem:[%s276 + $0x8] sm:$0xff]
        %v299 = vld [vmem:[%s276 + $0x10] sm:$0xff]
        %v300 = vld [vmem:[%s276 + $0x18] sm:$0xff]
        %v301 = vunpack.c.l.s8.bf16 %v297
        %v302 = vunpack.c.l.s8.bf16 %v298
        %v303 = vunpack.c.l.s8.bf16 %v299
        %v304 = vunpack.c.l.s8.bf16 %v300
        %v305 = vunpack.c.h.s8.bf16 %v297
        %v306 = vunpack.c.h.s8.bf16 %v298
        %v307 = vunpack.c.h.s8.bf16 %v299
        %v308 = vunpack.c.h.s8.bf16 %v300
        %v317 = vunpack.c.l.b16 %v301
        %v318 = vunpack.c.l.b16 %v302
        %v319 = vunpack.c.l.b16 %v303
        %v320 = vunpack.c.l.b16 %v304
        %v321 = vunpack.c.h.b16 %v301
        %v322 = vunpack.c.h.b16 %v302
        %v323 = vunpack.c.h.b16 %v303
        %v324 = vunpack.c.h.b16 %v304
        %v325 = vunpack.c.l.b16 %v305
        %v326 = vunpack.c.l.b16 %v306
        %v327 = vunpack.c.l.b16 %v307
        %v328 = vunpack.c.l.b16 %v308
        %v329 = vunpack.c.h.b16 %v305
        %v330 = vunpack.c.h.b16 %v306
        %v331 = vunpack.c.h.b16 %v307
        %v332 = vunpack.c.h.b16 %v308
        %v333 = vpack.c.b16 %v318, %v317
        %v334 = vpack.c.b16 %v320, %v319
        %v335 = vpack.c.b16 %v322, %v321
        %v336 = vpack.c.b16 %v324, %v323
        %v337 = vpack.c.b16 %v326, %v325
        %v338 = vpack.c.b16 %v328, %v327
        %v339 = vpack.c.b16 %v330, %v329
        %v340 = vpack.c.b16 %v332, %v331
        %v349 = vmul.bf16 %v289, %v333
        %v350 = vmul.bf16 %v290, %v334
        %v351 = vmul.bf16 %v291, %v335
        %v352 = vmul.bf16 %v292, %v336
        %v353 = vmul.bf16 %v293, %v337
        %v354 = vmul.bf16 %v294, %v338
        %v355 = vmul.bf16 %v295, %v339
        %v356 = vmul.bf16 %v296, %v340
        %s357 = smul.u32 %s21, 512
        %v358 = vld [vmem:[#allocation2] sm:$0xff]
        %v359 = vld [vmem:[#allocation2 + $0x8] sm:$0xff]
        %v360 = vld [vmem:[#allocation2 + $0x10] sm:$0xff]
        %v361 = vld [vmem:[#allocation2 + $0x18] sm:$0xff]
        %s362 = sshra.s32 %s357, 3
        %s363 = sand.u32 %s357, 7
        %s364 = smul.addr %s362, 4
        %s365 = scalar_lea.vmem %s2, %s364
        %v366 = vld [vmem:[%s365] sm:$0xf]
        %v367 = vld [vmem:[%s365 + $0x4] sm:$0xf]
        %v368 = vld [vmem:[%s365 + $0x8] sm:$0xf]
        %v369 = vld [vmem:[%s365 + $0xc] sm:$0xf]
        %v370 = vld [vmem:[%s365 + $0x10] sm:$0xf]
        %v371 = vld [vmem:[%s365 + $0x14] sm:$0xf]
        %v372 = vld [vmem:[%s365 + $0x18] sm:$0xf]
        %v373 = vld [vmem:[%s365 + $0x1c] sm:$0xf]
        %v374 = vld [vmem:[%s365 + $0x20] sm:$0xf]
        %v375 = vld [vmem:[%s365 + $0x24] sm:$0xf]
        %v376 = vld [vmem:[%s365 + $0x28] sm:$0xf]
        %v377 = vld [vmem:[%s365 + $0x2c] sm:$0xf]
        %v378 = vld [vmem:[%s365 + $0x30] sm:$0xf]
        %v379 = vld [vmem:[%s365 + $0x34] sm:$0xf]
        %v380 = vld [vmem:[%s365 + $0x38] sm:$0xf]
        %v381 = vld [vmem:[%s365 + $0x3c] sm:$0xf]
        %v382 = vld [vmem:[%s365 + $0x40] sm:$0xf]
        %v383 = vld [vmem:[%s365 + $0x44] sm:$0xf]
        %v384 = vld [vmem:[%s365 + $0x48] sm:$0xf]
        %v385 = vld [vmem:[%s365 + $0x4c] sm:$0xf]
        %v386 = vld [vmem:[%s365 + $0x50] sm:$0xf]
        %v387 = vld [vmem:[%s365 + $0x54] sm:$0xf]
        %v388 = vld [vmem:[%s365 + $0x58] sm:$0xf]
        %v389 = vld [vmem:[%s365 + $0x5c] sm:$0xf]
        %v390 = vld [vmem:[%s365 + $0x60] sm:$0xf]
        %v391 = vld [vmem:[%s365 + $0x64] sm:$0xf]
        %v392 = vld [vmem:[%s365 + $0x68] sm:$0xf]
        %v393 = vld [vmem:[%s365 + $0x6c] sm:$0xf]
        %v394 = vld [vmem:[%s365 + $0x70] sm:$0xf]
        %v395 = vld [vmem:[%s365 + $0x74] sm:$0xf]
        %v396 = vld [vmem:[%s365 + $0x78] sm:$0xf]
        %v397 = vld [vmem:[%s365 + $0x7c] sm:$0xf]
        %v398 = vld [vmem:[%s365 + $0x80] sm:$0xf]
        %v399 = vld [vmem:[%s365 + $0x84] sm:$0xf]
        %v400 = vld [vmem:[%s365 + $0x88] sm:$0xf]
        %v401 = vld [vmem:[%s365 + $0x8c] sm:$0xf]
        %v402 = vld [vmem:[%s365 + $0x90] sm:$0xf]
        %v403 = vld [vmem:[%s365 + $0x94] sm:$0xf]
        %v404 = vld [vmem:[%s365 + $0x98] sm:$0xf]
        %v405 = vld [vmem:[%s365 + $0x9c] sm:$0xf]
        %v406 = vld [vmem:[%s365 + $0xa0] sm:$0xf]
        %v407 = vld [vmem:[%s365 + $0xa4] sm:$0xf]
        %v408 = vld [vmem:[%s365 + $0xa8] sm:$0xf]
        %v409 = vld [vmem:[%s365 + $0xac] sm:$0xf]
        %v410 = vld [vmem:[%s365 + $0xb0] sm:$0xf]
        %v411 = vld [vmem:[%s365 + $0xb4] sm:$0xf]
        %v412 = vld [vmem:[%s365 + $0xb8] sm:$0xf]
        %v413 = vld [vmem:[%s365 + $0xbc] sm:$0xf]
        %v414 = vld [vmem:[%s365 + $0xc0] sm:$0xf]
        %v415 = vld [vmem:[%s365 + $0xc4] sm:$0xf]
        %v416 = vld [vmem:[%s365 + $0xc8] sm:$0xf]
        %v417 = vld [vmem:[%s365 + $0xcc] sm:$0xf]
        %v418 = vld [vmem:[%s365 + $0xd0] sm:$0xf]
        %v419 = vld [vmem:[%s365 + $0xd4] sm:$0xf]
        %v420 = vld [vmem:[%s365 + $0xd8] sm:$0xf]
        %v421 = vld [vmem:[%s365 + $0xdc] sm:$0xf]
        %v422 = vld [vmem:[%s365 + $0xe0] sm:$0xf]
        %v423 = vld [vmem:[%s365 + $0xe4] sm:$0xf]
        %v424 = vld [vmem:[%s365 + $0xe8] sm:$0xf]
        %v425 = vld [vmem:[%s365 + $0xec] sm:$0xf]
        %v426 = vld [vmem:[%s365 + $0xf0] sm:$0xf]
        %v427 = vld [vmem:[%s365 + $0xf4] sm:$0xf]
        %v428 = vld [vmem:[%s365 + $0xf8] sm:$0xf]
        %v429 = vld [vmem:[%s365 + $0xfc] sm:$0xf]
        %v438 = vunpack.c.l.b16 %v349
        %v439 = vunpack.c.h.b16 %v349
        %v440 = vunpack.c.l.b16 %v350
        %v441 = vunpack.c.h.b16 %v350
        %v442 = vunpack.c.l.b16 %v351
        %v443 = vunpack.c.h.b16 %v351
        %v444 = vunpack.c.l.b16 %v352
        %v445 = vunpack.c.h.b16 %v352
        %v446 = vunpack.c.l.b16 %v353
        %v447 = vunpack.c.h.b16 %v353
        %v448 = vunpack.c.l.b16 %v354
        %v449 = vunpack.c.h.b16 %v354
        %v450 = vunpack.c.l.b16 %v355
        %v451 = vunpack.c.h.b16 %v355
        %v452 = vunpack.c.l.b16 %v356
        %v453 = vunpack.c.h.b16 %v356
        %v454 = vpack.c.b16 %v442, %v438
        %v455 = vpack.c.b16 %v443, %v439
        %v456 = vpack.c.b16 %v444, %v440
        %v457 = vpack.c.b16 %v445, %v441
        %v458 = vpack.c.b16 %v450, %v446
        %v459 = vpack.c.b16 %v451, %v447
        %v460 = vpack.c.b16 %v452, %v448
        %v461 = vpack.c.b16 %v453, %v449
        %v534 = vunpack.c.l.b16 %v366
        %v535 = vunpack.c.l.b16 %v367
        %v536 = vunpack.c.l.b16 %v368
        %v537 = vunpack.c.l.b16 %v369
        %v538 = vunpack.c.l.b16 %v370
        %v539 = vunpack.c.l.b16 %v371
        %v540 = vunpack.c.l.b16 %v372
        %v541 = vunpack.c.l.b16 %v373
        %v542 = vunpack.c.l.b16 %v374
        %v543 = vunpack.c.l.b16 %v375
        %v544 = vunpack.c.l.b16 %v376
        %v545 = vunpack.c.l.b16 %v377
        %v546 = vunpack.c.l.b16 %v378
        %v547 = vunpack.c.l.b16 %v379
        %v548 = vunpack.c.l.b16 %v380
        %v549 = vunpack.c.l.b16 %v381
        %v550 = vunpack.c.l.b16 %v382
        %v551 = vunpack.c.l.b16 %v383
        %v552 = vunpack.c.l.b16 %v384
        %v553 = vunpack.c.l.b16 %v385
        %v554 = vunpack.c.l.b16 %v386
        %v555 = vunpack.c.l.b16 %v387
        %v556 = vunpack.c.l.b16 %v388
        %v557 = vunpack.c.l.b16 %v389
        %v558 = vunpack.c.l.b16 %v390
        %v559 = vunpack.c.l.b16 %v391
        %v560 = vunpack.c.l.b16 %v392
        %v561 = vunpack.c.l.b16 %v393
        %v562 = vunpack.c.l.b16 %v394
        %v563 = vunpack.c.l.b16 %v395
        %v564 = vunpack.c.l.b16 %v396
        %v565 = vunpack.c.l.b16 %v397
        %v566 = vunpack.c.l.b16 %v398
        %v567 = vunpack.c.l.b16 %v399
        %v568 = vunpack.c.l.b16 %v400
        %v569 = vunpack.c.l.b16 %v401
        %v570 = vunpack.c.l.b16 %v402
        %v571 = vunpack.c.l.b16 %v403
        %v572 = vunpack.c.l.b16 %v404
        %v573 = vunpack.c.l.b16 %v405
        %v574 = vunpack.c.l.b16 %v406
        %v575 = vunpack.c.l.b16 %v407
        %v576 = vunpack.c.l.b16 %v408
        %v577 = vunpack.c.l.b16 %v409
        %v578 = vunpack.c.l.b16 %v410
        %v579 = vunpack.c.l.b16 %v411
        %v580 = vunpack.c.l.b16 %v412
        %v581 = vunpack.c.l.b16 %v413
        %v582 = vunpack.c.l.b16 %v414
        %v583 = vunpack.c.l.b16 %v415
        %v584 = vunpack.c.l.b16 %v416
        %v585 = vunpack.c.l.b16 %v417
        %v586 = vunpack.c.l.b16 %v418
        %v587 = vunpack.c.l.b16 %v419
        %v588 = vunpack.c.l.b16 %v420
        %v589 = vunpack.c.l.b16 %v421
        %v590 = vunpack.c.l.b16 %v422
        %v591 = vunpack.c.l.b16 %v423
        %v592 = vunpack.c.l.b16 %v424
        %v593 = vunpack.c.l.b16 %v425
        %v594 = vunpack.c.l.b16 %v426
        %v595 = vunpack.c.l.b16 %v427
        %v596 = vunpack.c.l.b16 %v428
        %v597 = vunpack.c.l.b16 %v429
        %v598 = vpack.c.b16 %v535, %v534
        %v599 = vpack.c.b16 %v537, %v536
        %v600 = vpack.c.b16 %v539, %v538
        %v601 = vpack.c.b16 %v541, %v540
        %v602 = vpack.c.b16 %v543, %v542
        %v603 = vpack.c.b16 %v545, %v544
        %v604 = vpack.c.b16 %v547, %v546
        %v605 = vpack.c.b16 %v549, %v548
        %v606 = vpack.c.b16 %v551, %v550
        %v607 = vpack.c.b16 %v553, %v552
        %v608 = vpack.c.b16 %v555, %v554
        %v609 = vpack.c.b16 %v557, %v556
        %v610 = vpack.c.b16 %v559, %v558
        %v611 = vpack.c.b16 %v561, %v560
        %v612 = vpack.c.b16 %v563, %v562
        %v613 = vpack.c.b16 %v565, %v564
        %v614 = vpack.c.b16 %v567, %v566
        %v615 = vpack.c.b16 %v569, %v568
        %v616 = vpack.c.b16 %v571, %v570
        %v617 = vpack.c.b16 %v573, %v572
        %v618 = vpack.c.b16 %v575, %v574
        %v619 = vpack.c.b16 %v577, %v576
        %v620 = vpack.c.b16 %v579, %v578
        %v621 = vpack.c.b16 %v581, %v580
        %v622 = vpack.c.b16 %v583, %v582
        %v623 = vpack.c.b16 %v585, %v584
        %v624 = vpack.c.b16 %v587, %v586
        %v625 = vpack.c.b16 %v589, %v588
        %v626 = vpack.c.b16 %v591, %v590
        %v627 = vpack.c.b16 %v593, %v592
        %v628 = vpack.c.b16 %v595, %v594
        %v629 = vpack.c.b16 %v597, %v596
        %662 = vmatprep.subr.bf16.mxu0 0
        %663 = vmatpush1.bf16.msra.mxu0 %v605
        %664 = vmatprep.subr.bf16.mxu0 0
        %665 = vmatpush1.bf16.msra.mxu0 %v604
        %666 = vmatprep.subr.bf16.mxu0 0
        %667 = vmatpush1.bf16.msra.mxu0 %v603
        %668 = vmatprep.subr.bf16.mxu0 0
        %669 = vmatpush1.bf16.msra.mxu0 %v602
        %670 = vmatprep.subr.bf16.mxu0 0
        %671 = vmatpush1.bf16.msra.mxu0 %v601
        %672 = vmatprep.subr.bf16.mxu0 0
        %673 = vmatpush1.bf16.msra.mxu0 %v600
        %674 = vmatprep.subr.bf16.mxu0 0
        %675 = vmatpush1.bf16.msra.mxu0 %v599
        %676 = vmatprep.subr.bf16.mxu0 0
        %677 = vmatpush1.bf16.msra.mxu0 %v598
        %678 = vmatprep.subr.bf16.mxu0 0
        %679 = vmatpush2.bf16.msra.mxu0 %v613
        %680 = vmatprep.subr.bf16.mxu0 0
        %681 = vmatpush2.bf16.msra.mxu0 %v612
        %682 = vmatprep.subr.bf16.mxu0 0
        %683 = vmatpush2.bf16.msra.mxu0 %v611
        %684 = vmatprep.subr.bf16.mxu0 0
        %685 = vmatpush2.bf16.msra.mxu0 %v610
        %686 = vmatprep.subr.bf16.mxu0 0
        %687 = vmatpush2.bf16.msra.mxu0 %v609
        %688 = vmatprep.subr.bf16.mxu0 0
        %689 = vmatpush2.bf16.msra.mxu0 %v608
        %690 = vmatprep.subr.bf16.mxu0 0
        %691 = vmatpush2.bf16.msra.mxu0 %v607
        %692 = vmatprep.subr.bf16.mxu0 0
        %693 = vmatpush2.bf16.msra.mxu0 %v606
        %694 = vmatprep.mubr.bf16.mxu0 %v455
        %695 = vmatmul.mubr.bf16.gmra.mxu0 %v454
        %v696 = vpop.f32.mrf.mxu0
        %v697 = vadd.f32 0.0, %v696
        %v698 = vpop.f32.mrf.mxu0
        %v699 = vpop.f32.mrf.mxu0
        %v700 = vadd.f32 0.0, %v699
        %v701 = vpop.f32.mrf.mxu0
        %702 = vmatprep.mubr.bf16.mxu0 %v459
        %703 = vmatmul.mubr.bf16.gmra.mxu0 %v458
        %v704 = vpop.f32.mrf.mxu0
        %v705 = vadd.f32 0.0, %v704
        %v706 = vpop.f32.mrf.mxu0
        %v707 = vpop.f32.mrf.mxu0
        %v708 = vadd.f32 0.0, %v707
        %v709 = vpop.f32.mrf.mxu0
        %710 = vdwg.mxu0
        %711 = vmatprep.subr.bf16.mxu0 0
        %712 = vmatpush1.bf16.msra.mxu0 %v621
        %713 = vmatprep.subr.bf16.mxu0 0
        %714 = vmatpush1.bf16.msra.mxu0 %v620
        %715 = vmatprep.subr.bf16.mxu0 0
        %716 = vmatpush1.bf16.msra.mxu0 %v619
        %717 = vmatprep.subr.bf16.mxu0 0
        %718 = vmatpush1.bf16.msra.mxu0 %v618
        %719 = vmatprep.subr.bf16.mxu0 0
        %720 = vmatpush1.bf16.msra.mxu0 %v617
        %721 = vmatprep.subr.bf16.mxu0 0
        %722 = vmatpush1.bf16.msra.mxu0 %v616
        %723 = vmatprep.subr.bf16.mxu0 0
        %724 = vmatpush1.bf16.msra.mxu0 %v615
        %725 = vmatprep.subr.bf16.mxu0 0
        %726 = vmatpush1.bf16.msra.mxu0 %v614
        %727 = vmatprep.subr.bf16.mxu0 0
        %728 = vmatpush2.bf16.msra.mxu0 %v629
        %729 = vmatprep.subr.bf16.mxu0 0
        %730 = vmatpush2.bf16.msra.mxu0 %v628
        %731 = vmatprep.subr.bf16.mxu0 0
        %732 = vmatpush2.bf16.msra.mxu0 %v627
        %733 = vmatprep.subr.bf16.mxu0 0
        %734 = vmatpush2.bf16.msra.mxu0 %v626
        %735 = vmatprep.subr.bf16.mxu0 0
        %736 = vmatpush2.bf16.msra.mxu0 %v625
        %737 = vmatprep.subr.bf16.mxu0 0
        %738 = vmatpush2.bf16.msra.mxu0 %v624
        %739 = vmatprep.subr.bf16.mxu0 0
        %740 = vmatpush2.bf16.msra.mxu0 %v623
        %741 = vmatprep.subr.bf16.mxu0 0
        %742 = vmatpush2.bf16.msra.mxu0 %v622
        %743 = vmatprep.mubr.bf16.mxu0 %v457
        %744 = vmatmul.mubr.bf16.gmra.mxu0 %v456
        %v745 = vpop.f32.mrf.mxu0
        %v746 = vadd.f32 %v697, %v745
        %v747 = vpop.f32.mrf.mxu0
        %v748 = vpop.f32.mrf.mxu0
        %v749 = vadd.f32 %v700, %v748
        %v750 = vpop.f32.mrf.mxu0
        %751 = vmatprep.mubr.bf16.mxu0 %v461
        %752 = vmatmul.mubr.bf16.gmra.mxu0 %v460
        %v753 = vpop.f32.mrf.mxu0
        %v754 = vadd.f32 %v705, %v753
        %v755 = vpop.f32.mrf.mxu0
        %v756 = vpop.f32.mrf.mxu0
        %v757 = vadd.f32 %v708, %v756
        %v758 = vpop.f32.mrf.mxu0
        %759 = vdwg.mxu0
        %v760 = vadd.f32 %v358, %v746
        %v761 = vadd.f32 %v359, %v749
        %v762 = vadd.f32 %v360, %v754
        %v763 = vadd.f32 %v361, %v757
        %vm764 = vcmask 261120
        %765 = vst.msk [vmem:[#allocation2] sm:$0xff] %vm764, %v760
        %766 = vst.msk [vmem:[#allocation2 + $0x8] sm:$0xff] %vm764, %v761
        %767 = vst.msk [vmem:[#allocation2 + $0x10] sm:$0xff] %vm764, %v762
        %768 = vst.msk [vmem:[#allocation2 + $0x18] sm:$0xff] %vm764, %v763
        %p769 = scmp.eq.s32.totalorder %s21, 1
        // Predicated region
        $region64: #{tpu_custom_call.1} parent=54 // pred_check
          %p770 = pneg %p769
        $region65: #{tpu_custom_call.1} parent=54 // pred_check_branch
          %772 = sbr.rel (%p770) target = $region67
        $region66: #{tpu_custom_call.1} parent=54 // pred_region
          %v773 = vld [vmem:[#allocation2] sm:$0xff]
          %v774 = vld [vmem:[#allocation2 + $0x8] sm:$0xff]
          %v775 = vld [vmem:[#allocation2 + $0x10] sm:$0xff]
          %v776 = vld [vmem:[#allocation2 + $0x18] sm:$0xff]
          %v777 = vld [vmem:[%s3] sm:$0x1]
          %v779 = vlaneseq
          %v780 = vshrl.u32 %v779, 7
          %v781 = vsub.s32 0, %v780
          %v782 = vrot.slane %v777, %v781
          %v784 = vadd.f32 %v773, %v782
          %v785 = vadd.f32 %v774, %v782
          %v786 = vadd.f32 %v775, %v782
          %v787 = vadd.f32 %v776, %v782
          %v788 = vmax.f32 %v784, 0.0
          %v789 = vmax.f32 %v785, 0.0
          %v790 = vmax.f32 %v786, 0.0
          %v791 = vmax.f32 %v787, 0.0
          %v792 = vpack.c.bf16 %v789, %v788
          %v793 = vpack.c.bf16 %v791, %v790
          %v796 = vunpack.c.l.b16 %v792
          %v797 = vunpack.c.h.b16 %v792
          %v798 = vunpack.c.l.b16 %v793
          %v799 = vunpack.c.h.b16 %v793
          %v800 = vpack.c.b16 %v796, %v796
          %v801 = vpack.c.b16 %v797, %v797
          %v802 = vpack.c.b16 %v798, %v798
          %v803 = vpack.c.b16 %v799, %v799
          %vm808 = vcmask 257024
          %809 = vst.msk [vmem:[#allocation4] sm:$0xf] %vm808, %v800
          %810 = vst.msk [vmem:[#allocation4 + $0x4] sm:$0xf] %vm808, %v801
          %811 = vst.msk [vmem:[#allocation4 + $0x8] sm:$0xf] %vm808, %v802
          %812 = vst.msk [vmem:[#allocation4 + $0xc] sm:$0xf] %vm808, %v803
        $region67: #{tpu_custom_call.1} parent=54 // pred_fallthru
          _
        // Predicated region
        $region68: #{tpu_custom_call.1} parent=54 // pred_check
          %p813 = pneg %p144
        $region69: #{tpu_custom_call.1} parent=54 // pred_check_branch
          %815 = sbr.rel (%p813) target = $region71
        $region70: #{tpu_custom_call.1} parent=54 // pred_region
          %s816 = smul.u32 4, %s20
          %s818 = ssub.s32 256, 256
          %819 = vsyncadd [#allocation5], %s818
          %s820 = smul.addr %s816, 64
          %s821 = scalar_lea.hbm %s4, %s820
          %s822 = sshll.u32 [#allocation4], 4
          %s823 = int_to_ptr.vmem [resolvable:$true] %s822
          %828 = dma.vmem_to_hbm [thread:$0]  %s823, 256, %s821, [#allocation5], 64, 64, 4
        $region71: #{tpu_custom_call.1} parent=54 // pred_fallthru
          _
        // Predicated region
        $region72: #{tpu_custom_call.1} parent=54 // pred_check
          %p829 = pneg %p144
        $region73: #{tpu_custom_call.1} parent=54 // pred_check_branch
          %831 = sbr.rel (%p829) target = $region75
        $region74: #{tpu_custom_call.1} parent=54 // pred_region
          %832 = dma.done [#allocation5], 256
        $region75: #{tpu_custom_call.1} parent=54 // pred_fallthru
          _
      $region55: #{tpu_custom_call.1} parent=5 // pred_fallthru
        _
      %p833 = scmp.le.s32.totalorder 2, %s11
      // Predicated region
      $region76: #{tpu_custom_call.1} parent=5 // pred_check
        %p834 = pneg %p833
      $region77: #{tpu_custom_call.1} parent=5 // pred_check_branch
        %836 = sbr.rel (%p834) target = $region79
      $region78: #{tpu_custom_call.1} parent=5 // pred_region
        %s837 = ssub.s32 %s11, 2
      $region79: #{tpu_custom_call.1} parent=5 // pred_fallthru
        _
    $region6: #{tpu_custom_call.1} parent=1 // loop_footer
      %s15 = sadd.s32 1, %s11
    $region7: #{tpu_custom_call.1} parent=1 // loop_footer_branch
      %10 = sbr.rel target = $region3
    $region8: #{tpu_custom_call.1} parent=1 // loop_exit
      _
    %838 = vsyncpa [#allocation5], 1
    %s839 = scalar_lea.sflag [#allocation5], 1
    %840 = vsyncpa %s839, 1

</llo_original>
